<compile_context>
chip_gen: v7x
topology: tpu7x:2x2x1
jax: 0.10.0
libtpu: 0.0.40
codegen_flags: <defaults>
</compile_context>

<pallas_src>
import functools

import jax
import jax.numpy as jnp
from jax.experimental import pallas as pl
from jax.experimental.pallas import tpu as pltpu


def _temporal_block_kernel(x_ref, w1_ref, w2_ref, wd_ref, keep_ref,
                           b1_ref, b2_ref, bd_ref, o_ref, *,
                           kernel_size, dilation, seg_len):
    # x_ref   : (1, Cin, T)      bf16   T = nb * L (nb batch segments on lanes)
    # w1_ref  : (K, Cout, Cin)   bf16   conv1 taps
    # w2_ref  : (K, Cout, Cout)  bf16   conv2 taps
    # wd_ref  : (Cout, Cin)      bf16   1x1 downsample
    # keep_ref: (K, T)           bf16   0/1 causal-pad / segment-boundary mask per tap
    # b*_ref  : (Cout, 1)        f32
    # o_ref   : (1, Cout, T)     f32    lane-dense output slab
    K = kernel_size
    x = x_ref[0]                                      # (Cin, T) bf16
    T = x.shape[1]

    def tap_operand(v, k):
        # Causal tap k operand: v shifted right by s = (K-1-k)*dilation lanes,
        # zero-filled at the start of every length-`seg_len` batch segment.
        # (keep[k] zeroes both the true causal pad and cross-segment bleed.)
        s = (K - 1 - k) * dilation
        z = jnp.zeros((v.shape[0], s), v.dtype)
        vs = jnp.concatenate([z, v[:, :T - s]], axis=1)
        return vs * keep_ref[pl.ds(k, 1), :]          # (1, T) bf16 mask, lane bcast

    # ---- conv1: one matmul per tap over all nb rows (tap K-1 is unshifted) ----
    z1 = jnp.dot(w1_ref[K - 1], x, preferred_element_type=jnp.float32)
    for k in range(K - 1):
        if (K - 1 - k) * dilation >= seg_len:
            continue                                  # tap lies entirely in the zero pad
        z1 = z1 + jnp.dot(w1_ref[k], tap_operand(x, k),
                          preferred_element_type=jnp.float32)
    h1 = jnp.maximum(z1 + b1_ref[...], 0.0)           # chomp is implicit; ReLU (f32)
    # TODO(synk): dropout layers are inference-mode identities; no RNG applied.
    h1 = h1.astype(x.dtype)                           # bf16 BEFORE the tap shuffles

    # ---- conv2: consumed straight from registers, same tap structure ----------
    z2 = jnp.dot(w2_ref[K - 1], h1, preferred_element_type=jnp.float32)
    for k in range(K - 1):
        if (K - 1 - k) * dilation >= seg_len:
            continue
        z2 = z2 + jnp.dot(w2_ref[k], tap_operand(h1, k),
                          preferred_element_type=jnp.float32)
    h2 = jnp.maximum(z2 + b2_ref[...], 0.0)

    # ---- 1x1 downsample residual (input block already resident) + final ReLU --
    res = jnp.dot(wd_ref[...], x, preferred_element_type=jnp.float32) + bd_ref[...]
    o_ref[0] = jnp.maximum(h2 + res, 0.0)             # single lane-dense store


def _pick_batch_block(n, batch_block):
    """Largest divisor of n that is <= batch_block, keeping >= 2 grid steps when
    possible so v7x's two TensorCores both get work on the 'parallel' axis."""
    cap = max(1, min(batch_block, n if n < 2 else n // 2))
    for nb in range(cap, 0, -1):
        if n % nb == 0:
            return nb
    return 1


def temporal_block_forward(x, w1, b1, w2, b2, wd, bd, *, dilation, pad,
                           batch_block=8, compute_dtype=jnp.bfloat16):
    """x: (N, Cin, L) NCL; PyTorch-layout weights (Cout, Cin, K) / (Cout, Cin, 1);
    returns (N, Cout, L) NCL."""
    N, Cin, L = x.shape
    Cout, _, K = w1.shape
    assert pad == (K - 1) * dilation, "TemporalBlock requires pad == (K-1)*dilation"

    nb = _pick_batch_block(N, batch_block)
    G = N // nb
    T = nb * L

    # Layout plumbing only: put nb batch segments side by side on the lane axis.
    xg = (x.reshape(G, nb, Cin, L).transpose(0, 2, 1, 3)
            .reshape(G, Cin, T).astype(compute_dtype))
    w1s = jnp.transpose(w1, (2, 0, 1)).astype(compute_dtype)        # (K, Cout, Cin)
    w2s = jnp.transpose(w2, (2, 0, 1)).astype(compute_dtype)        # (K, Cout, Cout)
    wds = wd[:, :, 0].astype(compute_dtype)                         # (Cout, Cin)
    b1c = b1.reshape(Cout, 1).astype(jnp.float32)
    b2c = b2.reshape(Cout, 1).astype(jnp.float32)
    bdc = bd.reshape(Cout, 1).astype(jnp.float32)

    # keep[k, b*L + t] = 1 iff t >= (K-1-k)*dilation  (causal zero pad per segment,
    # also masks the data that a shift drags across batch-segment boundaries).
    shifts = (K - 1 - jnp.arange(K)) * dilation
    keep = ((jnp.arange(T) % L)[None, :] >= shifts[:, None]).astype(compute_dtype)

    itemsize = jnp.dtype(compute_dtype).itemsize
    in_block = Cin * T * itemsize
    out_block = Cout * T * 4
    const_bytes = int((w1s.size + w2s.size + wds.size + keep.size) * itemsize
                      + 3 * Cout * 4)
    # Double-buffered activation blocks + (conservatively double-buffered)
    # constants + compiler-scratch margin, capped at 80% of this generation's
    # physical VMEM (v7x: 64 MiB/TC, v5e/v6e: 128 MiB).
    need = 2 * (in_block + out_block) + 2 * const_bytes + (2 << 20)
    try:
        vmem_cap = int(pltpu.get_tpu_info().vmem_capacity_bytes)
    except Exception:
        vmem_cap = 64 << 20
    vmem_limit = int(min(max(need, 4 << 20), (vmem_cap * 4) // 5))

    flops = int(2 * N * L * Cout * (K * Cin + K * Cout + Cin))
    bytes_accessed = int(xg.size * itemsize + N * Cout * L * 4 + const_bytes)

    kernel = functools.partial(_temporal_block_kernel, kernel_size=K,
                               dilation=dilation, seg_len=L)

    # Constant operands (weights/masks/biases) could additionally be marked
    # pipeline_mode=pl.Buffered(1) to skip their second VMEM buffer.
    out = pl.pallas_call(
        kernel,
        out_shape=jax.ShapeDtypeStruct((G, Cout, T), jnp.float32),
        grid_spec=pltpu.PrefetchScalarGridSpec(
            num_scalar_prefetch=0,
            grid=(G,),
            in_specs=[
                pl.BlockSpec((1, Cin, T), lambda g: (g, 0, 0)),
                pl.BlockSpec((K, Cout, Cin), lambda g: (0, 0, 0)),
                pl.BlockSpec((K, Cout, Cout), lambda g: (0, 0, 0)),
                pl.BlockSpec((Cout, Cin), lambda g: (0, 0)),
                pl.BlockSpec((K, T), lambda g: (0, 0)),
                pl.BlockSpec((Cout, 1), lambda g: (0, 0)),
                pl.BlockSpec((Cout, 1), lambda g: (0, 0)),
                pl.BlockSpec((Cout, 1), lambda g: (0, 0)),
            ],
            out_specs=pl.BlockSpec((1, Cout, T), lambda g: (g, 0, 0)),
        ),
        compiler_params=pltpu.CompilerParams(
            dimension_semantics=("parallel",),
            vmem_limit_bytes=vmem_limit),
        cost_estimate=pl.CostEstimate(flops=flops, transcendentals=0,
                                      bytes_accessed=bytes_accessed),
    )(xg, w1s, w2s, wds, keep, b1c, b2c, bdc)

    # Undo the batch-on-lanes packing (layout plumbing only).
    return (out.reshape(G, Cout, nb, L).transpose(0, 2, 1, 3)
               .reshape(N, Cout, L))


def _ref_forward(x, w1, b1, w2, b2, wd, bd, *, pad, dilation, mirror_bf16=False):
    """Pure-JAX reference mirroring the PyTorch module (eval mode).

    mirror_bf16=True rounds the matmul operands exactly the way the kernel does
    (bf16 operands, f32 accumulate) for a tight numerical comparison."""
    if mirror_bf16:
        cast = lambda a: a.astype(jnp.bfloat16).astype(jnp.float32)
    else:
        cast = lambda a: a
    hp = jax.lax.Precision.HIGHEST

    def conv(h, w, b):
        y = jax.lax.conv_general_dilated(
            h, w, window_strides=(1,), padding=[(pad, pad)],
            rhs_dilation=(dilation,), dimension_numbers=("NCH", "OIH", "NCH"),
            precision=hp)
        if pad > 0:
            y = y[:, :, :-pad]                        # Chomp1d
        return y + b[None, :, None]

    h1 = jax.nn.relu(conv(cast(x), cast(w1), b1))
    h2 = jax.nn.relu(conv(cast(h1), cast(w2), b2))
    res = jnp.einsum("ncl,oc->nol", cast(x), cast(wd)[:, :, 0],
                     precision=hp) + bd[None, :, None]
    return jax.nn.relu(h2 + res)


if __name__ == "__main__":
    N, Cin, Cout, L = 4, 4, 8, 16
    K, stride, dilation = 3, 1, 2
    pad = (K - 1) * dilation                          # TCN causal padding

    keys = jax.random.split(jax.random.PRNGKey(0), 9)
    x = jax.random.normal(keys[0], (N, Cin, L), jnp.float32)

    def weight_norm(v, g):
        # PyTorch weight_norm: w = g * v / ||v||, norm over all dims but dim 0.
        n = jnp.sqrt(jnp.sum(v * v, axis=(1, 2), keepdims=True))
        return g[:, None, None] * v / n

    v1 = 0.01 * jax.random.normal(keys[1], (Cout, Cin, K), jnp.float32)
    g1 = 1.0 + 0.1 * jax.random.normal(keys[2], (Cout,), jnp.float32)
    b1 = 0.1 * jax.random.normal(keys[3], (Cout,), jnp.float32)
    v2 = 0.01 * jax.random.normal(keys[4], (Cout, Cout, K), jnp.float32)
    g2 = 1.0 + 0.1 * jax.random.normal(keys[5], (Cout,), jnp.float32)
    b2 = 0.1 * jax.random.normal(keys[6], (Cout,), jnp.float32)
    wd = 0.01 * jax.random.normal(keys[7], (Cout, Cin, 1), jnp.float32)
    bd = 0.1 * jax.random.normal(keys[8], (Cout,), jnp.float32)

    w1 = weight_norm(v1, g1)
    w2 = weight_norm(v2, g2)

    fwd = jax.jit(functools.partial(temporal_block_forward,
                                    dilation=dilation, pad=pad, batch_block=8))
    out = jax.block_until_ready(fwd(x, w1, b1, w2, b2, wd, bd))
    assert out.shape == (N, Cout, L), out.shape

    # Tight check: reference with the kernel's bf16 operand rounding mirrored.
    ref_bf16 = _ref_forward(x, w1, b1, w2, b2, wd, bd, pad=pad,
                            dilation=dilation, mirror_bf16=True)
    assert jnp.allclose(out, ref_bf16, atol=1e-3, rtol=1e-3), \
        float(jnp.max(jnp.abs(out - ref_bf16)))

    # Loose check: full-f32 PyTorch-equivalent reference (bf16 operand error only).
    ref_f32 = _ref_forward(x, w1, b1, w2, b2, wd, bd, pad=pad,
                           dilation=dilation, mirror_bf16=False)
    assert jnp.allclose(out, ref_f32, atol=2e-2, rtol=2e-2), \
        float(jnp.max(jnp.abs(out - ref_f32)))

    print("KERNEL_OK")
</pallas_src>

<mosaic_0001>
module attributes {stable_mosaic.version = 11 : i64} {
  func.func @_temporal_block_kernel(%arg0: i32, %arg1: memref<1x4x32xbf16, #tpu.memory_space<vmem>>, %arg2: memref<3x8x4xbf16, #tpu.memory_space<vmem>>, %arg3: memref<3x8x8xbf16, #tpu.memory_space<vmem>>, %arg4: memref<8x4xbf16, #tpu.memory_space<vmem>>, %arg5: memref<3x32xbf16, #tpu.memory_space<vmem>>, %arg6: memref<8x1xf32, #tpu.memory_space<vmem>>, %arg7: memref<8x1xf32, #tpu.memory_space<vmem>>, %arg8: memref<8x1xf32, #tpu.memory_space<vmem>>, %arg9: memref<1x8x32xf32, #tpu.memory_space<vmem>>) attributes {dimension_semantics = [#tpu.dimension_semantics<parallel>], iteration_bounds = array<i64: 2>, scalar_prefetch = 0 : i64, scratch_operands = 0 : i64, tpu.core_type = #tpu.core_type<tc>, window_params = [{transform_indices = @transform_0, window_bounds = array<i64: 1, 4, 32>}, {pipeline_mode = #tpu.pipeline_mode<synchronous>, transform_indices = @transform_1, window_bounds = array<i64: 3, 8, 4>}, {pipeline_mode = #tpu.pipeline_mode<synchronous>, transform_indices = @transform_2, window_bounds = array<i64: 3, 8, 8>}, {pipeline_mode = #tpu.pipeline_mode<synchronous>, transform_indices = @transform_3, window_bounds = array<i64: 8, 4>}, {pipeline_mode = #tpu.pipeline_mode<synchronous>, transform_indices = @transform_4, window_bounds = array<i64: 3, 32>}, {pipeline_mode = #tpu.pipeline_mode<synchronous>, transform_indices = @transform_5, window_bounds = array<i64: 8, 1>}, {pipeline_mode = #tpu.pipeline_mode<synchronous>, transform_indices = @transform_6, window_bounds = array<i64: 8, 1>}, {pipeline_mode = #tpu.pipeline_mode<synchronous>, transform_indices = @transform_7, window_bounds = array<i64: 8, 1>}, {transform_indices = @transform_8, window_bounds = array<i64: 1, 8, 32>}]} {
    %c0 = arith.constant 0 : index
    %c0_0 = arith.constant 0 : index
    %c0_1 = arith.constant 0 : index
    %0 = vector.load %arg1[%c0, %c0_0, %c0_1] : memref<1x4x32xbf16, #tpu.memory_space<vmem>>, vector<1x4x32xbf16>
    %1 = vector.shape_cast %0 : vector<1x4x32xbf16> to vector<4x32xbf16>
    %c2 = arith.constant 2 : index
    %c0_2 = arith.constant 0 : index
    %c0_3 = arith.constant 0 : index
    %2 = vector.load %arg2[%c2, %c0_2, %c0_3] : memref<3x8x4xbf16, #tpu.memory_space<vmem>>, vector<1x8x4xbf16>
    %3 = vector.shape_cast %2 : vector<1x8x4xbf16> to vector<8x4xbf16>
    %cst = arith.constant dense<0.000000e+00> : vector<8x32xf32>
    %4 = tpu.matmul %3, %1, %cst {dimension_numbers = #tpu.dot_dimension_numbers<[1], [0], [0], [1], [0, 0, 1, 1], [], []>} : vector<8x4xbf16>, vector<4x32xbf16>, vector<8x32xf32> -> vector<8x32xf32>
    %c0_4 = arith.constant 0 : index
    %c0_5 = arith.constant 0 : index
    %c0_6 = arith.constant 0 : index
    %5 = vector.load %arg2[%c0_4, %c0_5, %c0_6] : memref<3x8x4xbf16, #tpu.memory_space<vmem>>, vector<1x8x4xbf16>
    %6 = vector.shape_cast %5 : vector<1x8x4xbf16> to vector<8x4xbf16>
    %cst_7 = arith.constant 0.000000e+00 : bf16
    %7 = vector.broadcast %cst_7 : bf16 to vector<4x4xbf16>
    %8 = vector.extract_strided_slice %1 {offsets = [0, 0], sizes = [4, 28], strides = [1, 1]} : vector<4x32xbf16> to vector<4x28xbf16>
    %9 = tpu.concatenate %7, %8 in 1 : vector<4x4xbf16>, vector<4x28xbf16> -> vector<4x32xbf16>
    %c0_8 = arith.constant 0 : index
    %c0_9 = arith.constant 0 : index
    %10 = vector.load %arg5[%c0_8, %c0_9] : memref<3x32xbf16, #tpu.memory_space<vmem>>, vector<1x32xbf16>
    %11 = vector.broadcast %10 : vector<1x32xbf16> to vector<4x32xbf16>
    %12 = arith.mulf %9, %11 : vector<4x32xbf16>
    %cst_10 = arith.constant dense<0.000000e+00> : vector<8x32xf32>
    %13 = tpu.matmul %6, %12, %cst_10 {dimension_numbers = #tpu.dot_dimension_numbers<[1], [0], [0], [1], [0, 0, 1, 1], [], []>} : vector<8x4xbf16>, vector<4x32xbf16>, vector<8x32xf32> -> vector<8x32xf32>
    %14 = arith.addf %4, %13 : vector<8x32xf32>
    %c1 = arith.constant 1 : index
    %c0_11 = arith.constant 0 : index
    %c0_12 = arith.constant 0 : index
    %15 = vector.load %arg2[%c1, %c0_11, %c0_12] : memref<3x8x4xbf16, #tpu.memory_space<vmem>>, vector<1x8x4xbf16>
    %16 = vector.shape_cast %15 : vector<1x8x4xbf16> to vector<8x4xbf16>
    %cst_13 = arith.constant 0.000000e+00 : bf16
    %17 = vector.broadcast %cst_13 : bf16 to vector<4x2xbf16>
    %18 = vector.extract_strided_slice %1 {offsets = [0, 0], sizes = [4, 30], strides = [1, 1]} : vector<4x32xbf16> to vector<4x30xbf16>
    %19 = tpu.concatenate %17, %18 in 1 : vector<4x2xbf16>, vector<4x30xbf16> -> vector<4x32xbf16>
    %c1_14 = arith.constant 1 : index
    %c0_15 = arith.constant 0 : index
    %20 = vector.load %arg5[%c1_14, %c0_15] : memref<3x32xbf16, #tpu.memory_space<vmem>>, vector<1x32xbf16>
    %21 = vector.broadcast %20 : vector<1x32xbf16> to vector<4x32xbf16>
    %22 = arith.mulf %19, %21 : vector<4x32xbf16>
    %cst_16 = arith.constant dense<0.000000e+00> : vector<8x32xf32>
    %23 = tpu.matmul %16, %22, %cst_16 {dimension_numbers = #tpu.dot_dimension_numbers<[1], [0], [0], [1], [0, 0, 1, 1], [], []>} : vector<8x4xbf16>, vector<4x32xbf16>, vector<8x32xf32> -> vector<8x32xf32>
    %24 = arith.addf %14, %23 : vector<8x32xf32>
    %c0_17 = arith.constant 0 : index
    %c0_18 = arith.constant 0 : index
    %25 = vector.load %arg6[%c0_17, %c0_18] : memref<8x1xf32, #tpu.memory_space<vmem>>, vector<8x1xf32>
    %26 = vector.broadcast %25 : vector<8x1xf32> to vector<8x32xf32>
    %27 = arith.addf %24, %26 : vector<8x32xf32>
    %cst_19 = arith.constant 0.000000e+00 : f32
    %28 = vector.broadcast %cst_19 : f32 to vector<8x32xf32>
    %29 = arith.maximumf %27, %28 : vector<8x32xf32>
    %30 = arith.truncf %29 : vector<8x32xf32> to vector<8x32xbf16>
    %c2_20 = arith.constant 2 : index
    %c0_21 = arith.constant 0 : index
    %c0_22 = arith.constant 0 : index
    %31 = vector.load %arg3[%c2_20, %c0_21, %c0_22] : memref<3x8x8xbf16, #tpu.memory_space<vmem>>, vector<1x8x8xbf16>
    %32 = vector.shape_cast %31 : vector<1x8x8xbf16> to vector<8x8xbf16>
    %cst_23 = arith.constant dense<0.000000e+00> : vector<8x32xf32>
    %33 = tpu.matmul %32, %30, %cst_23 {dimension_numbers = #tpu.dot_dimension_numbers<[1], [0], [0], [1], [0, 0, 1, 1], [], []>} : vector<8x8xbf16>, vector<8x32xbf16>, vector<8x32xf32> -> vector<8x32xf32>
    %c0_24 = arith.constant 0 : index
    %c0_25 = arith.constant 0 : index
    %c0_26 = arith.constant 0 : index
    %34 = vector.load %arg3[%c0_24, %c0_25, %c0_26] : memref<3x8x8xbf16, #tpu.memory_space<vmem>>, vector<1x8x8xbf16>
    %35 = vector.shape_cast %34 : vector<1x8x8xbf16> to vector<8x8xbf16>
    %cst_27 = arith.constant 0.000000e+00 : bf16
    %36 = vector.broadcast %cst_27 : bf16 to vector<8x4xbf16>
    %37 = vector.extract_strided_slice %30 {offsets = [0, 0], sizes = [8, 28], strides = [1, 1]} : vector<8x32xbf16> to vector<8x28xbf16>
    %38 = tpu.concatenate %36, %37 in 1 : vector<8x4xbf16>, vector<8x28xbf16> -> vector<8x32xbf16>
    %c0_28 = arith.constant 0 : index
    %c0_29 = arith.constant 0 : index
    %39 = vector.load %arg5[%c0_28, %c0_29] : memref<3x32xbf16, #tpu.memory_space<vmem>>, vector<1x32xbf16>
    %40 = vector.broadcast %39 : vector<1x32xbf16> to vector<8x32xbf16>
    %41 = arith.mulf %38, %40 : vector<8x32xbf16>
    %cst_30 = arith.constant dense<0.000000e+00> : vector<8x32xf32>
    %42 = tpu.matmul %35, %41, %cst_30 {dimension_numbers = #tpu.dot_dimension_numbers<[1], [0], [0], [1], [0, 0, 1, 1], [], []>} : vector<8x8xbf16>, vector<8x32xbf16>, vector<8x32xf32> -> vector<8x32xf32>
    %43 = arith.addf %33, %42 : vector<8x32xf32>
    %c1_31 = arith.constant 1 : index
    %c0_32 = arith.constant 0 : index
    %c0_33 = arith.constant 0 : index
    %44 = vector.load %arg3[%c1_31, %c0_32, %c0_33] : memref<3x8x8xbf16, #tpu.memory_space<vmem>>, vector<1x8x8xbf16>
    %45 = vector.shape_cast %44 : vector<1x8x8xbf16> to vector<8x8xbf16>
    %cst_34 = arith.constant 0.000000e+00 : bf16
    %46 = vector.broadcast %cst_34 : bf16 to vector<8x2xbf16>
    %47 = vector.extract_strided_slice %30 {offsets = [0, 0], sizes = [8, 30], strides = [1, 1]} : vector<8x32xbf16> to vector<8x30xbf16>
    %48 = tpu.concatenate %46, %47 in 1 : vector<8x2xbf16>, vector<8x30xbf16> -> vector<8x32xbf16>
    %c1_35 = arith.constant 1 : index
    %c0_36 = arith.constant 0 : index
    %49 = vector.load %arg5[%c1_35, %c0_36] : memref<3x32xbf16, #tpu.memory_space<vmem>>, vector<1x32xbf16>
    %50 = vector.broadcast %49 : vector<1x32xbf16> to vector<8x32xbf16>
    %51 = arith.mulf %48, %50 : vector<8x32xbf16>
    %cst_37 = arith.constant dense<0.000000e+00> : vector<8x32xf32>
    %52 = tpu.matmul %45, %51, %cst_37 {dimension_numbers = #tpu.dot_dimension_numbers<[1], [0], [0], [1], [0, 0, 1, 1], [], []>} : vector<8x8xbf16>, vector<8x32xbf16>, vector<8x32xf32> -> vector<8x32xf32>
    %53 = arith.addf %43, %52 : vector<8x32xf32>
    %c0_38 = arith.constant 0 : index
    %c0_39 = arith.constant 0 : index
    %54 = vector.load %arg7[%c0_38, %c0_39] : memref<8x1xf32, #tpu.memory_space<vmem>>, vector<8x1xf32>
    %55 = vector.broadcast %54 : vector<8x1xf32> to vector<8x32xf32>
    %56 = arith.addf %53, %55 : vector<8x32xf32>
    %cst_40 = arith.constant 0.000000e+00 : f32
    %57 = vector.broadcast %cst_40 : f32 to vector<8x32xf32>
    %58 = arith.maximumf %56, %57 : vector<8x32xf32>
    %c0_41 = arith.constant 0 : index
    %c0_42 = arith.constant 0 : index
    %59 = vector.load %arg4[%c0_41, %c0_42] : memref<8x4xbf16, #tpu.memory_space<vmem>>, vector<8x4xbf16>
    %cst_43 = arith.constant dense<0.000000e+00> : vector<8x32xf32>
    %60 = tpu.matmul %59, %1, %cst_43 {dimension_numbers = #tpu.dot_dimension_numbers<[1], [0], [0], [1], [0, 0, 1, 1], [], []>} : vector<8x4xbf16>, vector<4x32xbf16>, vector<8x32xf32> -> vector<8x32xf32>
    %c0_44 = arith.constant 0 : index
    %c0_45 = arith.constant 0 : index
    %61 = vector.load %arg8[%c0_44, %c0_45] : memref<8x1xf32, #tpu.memory_space<vmem>>, vector<8x1xf32>
    %62 = vector.broadcast %61 : vector<8x1xf32> to vector<8x32xf32>
    %63 = arith.addf %60, %62 : vector<8x32xf32>
    %64 = arith.addf %58, %63 : vector<8x32xf32>
    %cst_46 = arith.constant 0.000000e+00 : f32
    %65 = vector.broadcast %cst_46 : f32 to vector<8x32xf32>
    %66 = arith.maximumf %64, %65 : vector<8x32xf32>
    %c0_47 = arith.constant 0 : index
    %c0_48 = arith.constant 0 : index
    %c0_49 = arith.constant 0 : index
    %67 = vector.load %arg9[%c0_47, %c0_48, %c0_49] : memref<1x8x32xf32, #tpu.memory_space<vmem>>, vector<1x8x32xf32>
    %68 = vector.shape_cast %67 : vector<1x8x32xf32> to vector<8x32xf32>
    %69 = vector.shape_cast %66 : vector<8x32xf32> to vector<1x8x32xf32>
    tpu.vector_store %arg9[%c0_47, %c0_48, %c0_49], %69 {strides = array<i32>} : memref<1x8x32xf32, #tpu.memory_space<vmem>>, vector<1x8x32xf32>,
    return
  }
  func.func @transform_0(%arg0: i32) -> (i32, i32, i32) {
    %c0_i32 = arith.constant 0 : i32
    %c0_i32_0 = arith.constant 0 : i32
    %c0_i32_1 = arith.constant 0 : i32
    return %arg0, %c0_i32, %c0_i32_0 : i32, i32, i32
  }
  func.func @transform_1(%arg0: i32) -> (i32, i32, i32) {
    %c0_i32 = arith.constant 0 : i32
    %c0_i32_0 = arith.constant 0 : i32
    %c0_i32_1 = arith.constant 0 : i32
    %c0_i32_2 = arith.constant 0 : i32
    return %c0_i32, %c0_i32_0, %c0_i32_1 : i32, i32, i32
  }
  func.func @transform_2(%arg0: i32) -> (i32, i32, i32) {
    %c0_i32 = arith.constant 0 : i32
    %c0_i32_0 = arith.constant 0 : i32
    %c0_i32_1 = arith.constant 0 : i32
    %c0_i32_2 = arith.constant 0 : i32
    return %c0_i32, %c0_i32_0, %c0_i32_1 : i32, i32, i32
  }
  func.func @transform_3(%arg0: i32) -> (i32, i32) {
    %c0_i32 = arith.constant 0 : i32
    %c0_i32_0 = arith.constant 0 : i32
    %c0_i32_1 = arith.constant 0 : i32
    return %c0_i32, %c0_i32_0 : i32, i32
  }
  func.func @transform_4(%arg0: i32) -> (i32, i32) {
    %c0_i32 = arith.constant 0 : i32
    %c0_i32_0 = arith.constant 0 : i32
    %c0_i32_1 = arith.constant 0 : i32
    return %c0_i32, %c0_i32_0 : i32, i32
  }
  func.func @transform_5(%arg0: i32) -> (i32, i32) {
    %c0_i32 = arith.constant 0 : i32
    %c0_i32_0 = arith.constant 0 : i32
    %c0_i32_1 = arith.constant 0 : i32
    return %c0_i32, %c0_i32_0 : i32, i32
  }
  func.func @transform_6(%arg0: i32) -> (i32, i32) {
    %c0_i32 = arith.constant 0 : i32
    %c0_i32_0 = arith.constant 0 : i32
    %c0_i32_1 = arith.constant 0 : i32
    return %c0_i32, %c0_i32_0 : i32, i32
  }
  func.func @transform_7(%arg0: i32) -> (i32, i32) {
    %c0_i32 = arith.constant 0 : i32
    %c0_i32_0 = arith.constant 0 : i32
    %c0_i32_1 = arith.constant 0 : i32
    return %c0_i32, %c0_i32_0 : i32, i32
  }
  func.func @transform_8(%arg0: i32) -> (i32, i32, i32) {
    %c0_i32 = arith.constant 0 : i32
    %c0_i32_0 = arith.constant 0 : i32
    %c0_i32_1 = arith.constant 0 : i32
    return %arg0, %c0_i32, %c0_i32_0 : i32, i32, i32
  }
}

</mosaic_0001>

<llo_original>
// kernel: temporal_block_forward.1
$region0: #{temporal_block_forward.1}
  #allocation0 [shape = 'u32[]', space=smem, size = 0x4, offset = 0x4, fixed_abs, tag = 'smem constant byte address 0x4 - core index']
  #allocation1 [shape = 'u32[144,128]{1,0:T(1,128)}', space=vmem, size = 0x12000, scoped, tag = 'internal scratch']
  %s0 = inlined_call_operand.vmem [shape: bf16[2,4,32], index: 0, kind: input, shape index: {}]
  %s1 = inlined_call_operand.vmem [shape: bf16[3,8,4], index: 1, kind: input, shape index: {}]
  %s2 = inlined_call_operand.vmem [shape: bf16[3,8,8], index: 2, kind: input, shape index: {}]
  %s3 = inlined_call_operand.vmem [shape: bf16[8,4], index: 3, kind: input, shape index: {}]
  %s4 = inlined_call_operand.vmem [shape: bf16[3,32], index: 4, kind: input, shape index: {}]
  %s5 = inlined_call_operand.vmem [shape: f32[8,1], index: 5, kind: input, shape index: {}]
  %s6 = inlined_call_operand.vmem [shape: f32[8,1], index: 6, kind: input, shape index: {}]
  %s7 = inlined_call_operand.vmem [shape: f32[8,1], index: 7, kind: input, shape index: {}]
  %s8 = inlined_call_operand.vmem [shape: f32[2,8,32], index: 8, kind: output, shape index: {}]
  %s9 = sld [smem:[#allocation0]]
  $region65: #{temporal_block_forward.1} parent=0
    _
  %s11 = ssub.s32 1, %s9
  %s12 = scalar_select 0, %s11, %s9
  loop: start=0, step=1, limit=4
  $region2: #{temporal_block_forward.1} parent=0 // loop_pre_header
    _
  $region3: #{temporal_block_forward.1} parent=0 // loop_header
    %s14 = sphi 0, %s18
    %p15 = scmp.ge.s32.totalorder %s14, 4
    %s24 = sphi 0, %s26
    %s27 = sphi 0, %s24
    %s28 = sphi 0, %s27
    %s44 = sphi 0, %s28
    %s48 = sphi 0, %s48
    %s50 = sphi 0, %s48
    %s51 = sphi 0, %s50
    %s65 = sphi 0, %s51
    %s69 = sphi 0, %s69
    %s71 = sphi 0, %s69
    %s72 = sphi 0, %s71
    %s86 = sphi 0, %s72
    %s90 = sphi 0, %s90
    %s92 = sphi 0, %s90
    %s93 = sphi 0, %s92
    %s107 = sphi 0, %s93
    %s111 = sphi 0, %s111
    %s113 = sphi 0, %s111
    %s114 = sphi 0, %s113
    %s128 = sphi 0, %s114
    %s132 = sphi 0, %s132
    %s134 = sphi 0, %s132
    %s135 = sphi 0, %s134
    %s149 = sphi 0, %s135
    %s153 = sphi 0, %s153
    %s155 = sphi 0, %s153
    %s156 = sphi 0, %s155
    %s170 = sphi 0, %s156
    %s174 = sphi 0, %s174
    %s176 = sphi 0, %s174
    %s177 = sphi 0, %s176
    %s191 = sphi 0, %s177
    %s197 = sphi 0, %s199
    %s200 = sphi 0, %s197
    %s201 = sphi 0, %s200
    %s217 = sphi 0, %s201
  $region4: #{temporal_block_forward.1} parent=0 // loop_header_branch
    %17 = sbr.rel (%p15) target = $region8
  $region5: #{temporal_block_forward.1} parent=0 // loop_body
    %s19 = ssub.s32 %s14, 1
    %s20 = ssub.s32 %s14, 2
    %s21 = sadd.s32 %s14, 1
    %s22 = ssub.s32 %s14, %s21
    %p23 = scmp.eq.s32.totalorder %s22, 0
    %s25 = sadd.s32 %s24, 1
    %s26 = scalar_select %p23, %s24, %s25
    %p29 = pneg %p23
    %p30 = scmp.eq.s32.totalorder %s14, 1
    %p31 = por %p29, %p30
    %p32 = scmp.ne.s32.totalorder %s24, %s27
    %p33 = scmp.eq.s32.totalorder %s14, 0
    %p34 = por %p32, %p33
    %p35 = scmp.ne.s32.totalorder %s24, %s27
    %p36 = scmp.eq.s32.totalorder %s19, 1
    %p37 = por %p35, %p36
    %p38 = scmp.ne.s32.totalorder %s27, %s28
    %p39 = scmp.eq.s32.totalorder %s19, 0
    %p40 = por %p38, %p39
    %p41 = scmp.ne.s32.totalorder %s27, %s28
    %p42 = scmp.eq.s32.totalorder %s20, 1
    %p43 = por %p41, %p42
    %p45 = scmp.ne.s32.totalorder %s28, %s44
    %p46 = scmp.eq.s32.totalorder %s20, 0
    %p47 = por %p45, %p46
    %s49 = sadd.s32 %s48, 1
    %p52 = scmp.eq.s32.totalorder %s14, 1
    %p53 = scmp.ne.s32.totalorder %s48, %s50
    %p54 = scmp.eq.s32.totalorder %s14, 0
    %p55 = por %p53, %p54
    %p56 = scmp.ne.s32.totalorder %s48, %s50
    %p57 = scmp.eq.s32.totalorder %s19, 1
    %p58 = por %p56, %p57
    %p59 = scmp.ne.s32.totalorder %s50, %s51
    %p60 = scmp.eq.s32.totalorder %s19, 0
    %p61 = por %p59, %p60
    %p62 = scmp.ne.s32.totalorder %s50, %s51
    %p63 = scmp.eq.s32.totalorder %s20, 1
    %p64 = por %p62, %p63
    %p66 = scmp.ne.s32.totalorder %s51, %s65
    %p67 = scmp.eq.s32.totalorder %s20, 0
    %p68 = por %p66, %p67
    %s70 = sadd.s32 %s69, 1
    %p73 = scmp.eq.s32.totalorder %s14, 1
    %p74 = scmp.ne.s32.totalorder %s69, %s71
    %p75 = scmp.eq.s32.totalorder %s14, 0
    %p76 = por %p74, %p75
    %p77 = scmp.ne.s32.totalorder %s69, %s71
    %p78 = scmp.eq.s32.totalorder %s19, 1
    %p79 = por %p77, %p78
    %p80 = scmp.ne.s32.totalorder %s71, %s72
    %p81 = scmp.eq.s32.totalorder %s19, 0
    %p82 = por %p80, %p81
    %p83 = scmp.ne.s32.totalorder %s71, %s72
    %p84 = scmp.eq.s32.totalorder %s20, 1
    %p85 = por %p83, %p84
    %p87 = scmp.ne.s32.totalorder %s72, %s86
    %p88 = scmp.eq.s32.totalorder %s20, 0
    %p89 = por %p87, %p88
    %s91 = sadd.s32 %s90, 1
    %p94 = scmp.eq.s32.totalorder %s14, 1
    %p95 = scmp.ne.s32.totalorder %s90, %s92
    %p96 = scmp.eq.s32.totalorder %s14, 0
    %p97 = por %p95, %p96
    %p98 = scmp.ne.s32.totalorder %s90, %s92
    %p99 = scmp.eq.s32.totalorder %s19, 1
    %p100 = por %p98, %p99
    %p101 = scmp.ne.s32.totalorder %s92, %s93
    %p102 = scmp.eq.s32.totalorder %s19, 0
    %p103 = por %p101, %p102
    %p104 = scmp.ne.s32.totalorder %s92, %s93
    %p105 = scmp.eq.s32.totalorder %s20, 1
    %p106 = por %p104, %p105
    %p108 = scmp.ne.s32.totalorder %s93, %s107
    %p109 = scmp.eq.s32.totalorder %s20, 0
    %p110 = por %p108, %p109
    %s112 = sadd.s32 %s111, 1
    %p115 = scmp.eq.s32.totalorder %s14, 1
    %p116 = scmp.ne.s32.totalorder %s111, %s113
    %p117 = scmp.eq.s32.totalorder %s14, 0
    %p118 = por %p116, %p117
    %p119 = scmp.ne.s32.totalorder %s111, %s113
    %p120 = scmp.eq.s32.totalorder %s19, 1
    %p121 = por %p119, %p120
    %p122 = scmp.ne.s32.totalorder %s113, %s114
    %p123 = scmp.eq.s32.totalorder %s19, 0
    %p124 = por %p122, %p123
    %p125 = scmp.ne.s32.totalorder %s113, %s114
    %p126 = scmp.eq.s32.totalorder %s20, 1
    %p127 = por %p125, %p126
    %p129 = scmp.ne.s32.totalorder %s114, %s128
    %p130 = scmp.eq.s32.totalorder %s20, 0
    %p131 = por %p129, %p130
    %s133 = sadd.s32 %s132, 1
    %p136 = scmp.eq.s32.totalorder %s14, 1
    %p137 = scmp.ne.s32.totalorder %s132, %s134
    %p138 = scmp.eq.s32.totalorder %s14, 0
    %p139 = por %p137, %p138
    %p140 = scmp.ne.s32.totalorder %s132, %s134
    %p141 = scmp.eq.s32.totalorder %s19, 1
    %p142 = por %p140, %p141
    %p143 = scmp.ne.s32.totalorder %s134, %s135
    %p144 = scmp.eq.s32.totalorder %s19, 0
    %p145 = por %p143, %p144
    %p146 = scmp.ne.s32.totalorder %s134, %s135
    %p147 = scmp.eq.s32.totalorder %s20, 1
    %p148 = por %p146, %p147
    %p150 = scmp.ne.s32.totalorder %s135, %s149
    %p151 = scmp.eq.s32.totalorder %s20, 0
    %p152 = por %p150, %p151
    %s154 = sadd.s32 %s153, 1
    %p157 = scmp.eq.s32.totalorder %s14, 1
    %p158 = scmp.ne.s32.totalorder %s153, %s155
    %p159 = scmp.eq.s32.totalorder %s14, 0
    %p160 = por %p158, %p159
    %p161 = scmp.ne.s32.totalorder %s153, %s155
    %p162 = scmp.eq.s32.totalorder %s19, 1
    %p163 = por %p161, %p162
    %p164 = scmp.ne.s32.totalorder %s155, %s156
    %p165 = scmp.eq.s32.totalorder %s19, 0
    %p166 = por %p164, %p165
    %p167 = scmp.ne.s32.totalorder %s155, %s156
    %p168 = scmp.eq.s32.totalorder %s20, 1
    %p169 = por %p167, %p168
    %p171 = scmp.ne.s32.totalorder %s156, %s170
    %p172 = scmp.eq.s32.totalorder %s20, 0
    %p173 = por %p171, %p172
    %s175 = sadd.s32 %s174, 1
    %p178 = scmp.eq.s32.totalorder %s14, 1
    %p179 = scmp.ne.s32.totalorder %s174, %s176
    %p180 = scmp.eq.s32.totalorder %s14, 0
    %p181 = por %p179, %p180
    %p182 = scmp.ne.s32.totalorder %s174, %s176
    %p183 = scmp.eq.s32.totalorder %s19, 1
    %p184 = por %p182, %p183
    %p185 = scmp.ne.s32.totalorder %s176, %s177
    %p186 = scmp.eq.s32.totalorder %s19, 0
    %p187 = por %p185, %p186
    %p188 = scmp.ne.s32.totalorder %s176, %s177
    %p189 = scmp.eq.s32.totalorder %s20, 1
    %p190 = por %p188, %p189
    %p192 = scmp.ne.s32.totalorder %s177, %s191
    %p193 = scmp.eq.s32.totalorder %s20, 0
    %p194 = por %p192, %p193
    %s195 = ssub.s32 %s14, %s21
    %p196 = scmp.eq.s32.totalorder %s195, 0
    %s198 = sadd.s32 %s197, 1
    %s199 = scalar_select %p196, %s197, %s198
    %p202 = pneg %p196
    %p203 = scmp.eq.s32.totalorder %s14, 1
    %p204 = por %p202, %p203
    %p205 = scmp.ne.s32.totalorder %s197, %s200
    %p206 = scmp.eq.s32.totalorder %s14, 0
    %p207 = por %p205, %p206
    %p208 = scmp.ne.s32.totalorder %s197, %s200
    %p209 = scmp.eq.s32.totalorder %s19, 1
    %p210 = por %p208, %p209
    %p211 = scmp.ne.s32.totalorder %s200, %s201
    %p212 = scmp.eq.s32.totalorder %s19, 0
    %p213 = por %p211, %p212
    %p214 = scmp.ne.s32.totalorder %s200, %s201
    %p215 = scmp.eq.s32.totalorder %s20, 1
    %p216 = por %p214, %p215
    %p218 = scmp.ne.s32.totalorder %s201, %s217
    %p219 = scmp.eq.s32.totalorder %s20, 0
    %p220 = por %p218, %p219
    %p221 = scmp.le.s32.totalorder 1, %s14
    %p222 = scmp.lt.s32.totalorder %s14, 3
    %p223 = pnand %p221, %p222
    %p224 = pneg %p223
    // Predicated region
    $region9: #{temporal_block_forward.1} parent=5 // pred_check
      _
    $region10: #{temporal_block_forward.1} parent=5 // pred_check_branch
      %226 = sbr.rel (%p223) target = $region12
    $region11: #{temporal_block_forward.1} parent=5 // pred_region
      %s227 = ssub.s32 %s14, 1
      // Predicated region
      $region13: #{temporal_block_forward.1} parent=11 // pred_check
        %p228 = pneg %p61
      $region14: #{temporal_block_forward.1} parent=11 // pred_check_branch
        %230 = sbr.rel (%p228) target = $region16
      $region15: #{temporal_block_forward.1} parent=11 // pred_region
        _
      $region16: #{temporal_block_forward.1} parent=11 // pred_fallthru
        _
      // Predicated region
      $region17: #{temporal_block_forward.1} parent=11 // pred_check
        %p231 = pneg %p82
      $region18: #{temporal_block_forward.1} parent=11 // pred_check_branch
        %233 = sbr.rel (%p231) target = $region20
      $region19: #{temporal_block_forward.1} parent=11 // pred_region
        _
      $region20: #{temporal_block_forward.1} parent=11 // pred_fallthru
        _
      // Predicated region
      $region21: #{temporal_block_forward.1} parent=11 // pred_check
        %p234 = pneg %p103
      $region22: #{temporal_block_forward.1} parent=11 // pred_check_branch
        %236 = sbr.rel (%p234) target = $region24
      $region23: #{temporal_block_forward.1} parent=11 // pred_region
        _
      $region24: #{temporal_block_forward.1} parent=11 // pred_fallthru
        _
      // Predicated region
      $region25: #{temporal_block_forward.1} parent=11 // pred_check
        %p237 = pneg %p124
      $region26: #{temporal_block_forward.1} parent=11 // pred_check_branch
        %239 = sbr.rel (%p237) target = $region28
      $region27: #{temporal_block_forward.1} parent=11 // pred_region
        _
      $region28: #{temporal_block_forward.1} parent=11 // pred_fallthru
        _
      // Predicated region
      $region29: #{temporal_block_forward.1} parent=11 // pred_check
        %p240 = pneg %p145
      $region30: #{temporal_block_forward.1} parent=11 // pred_check_branch
        %242 = sbr.rel (%p240) target = $region32
      $region31: #{temporal_block_forward.1} parent=11 // pred_region
        _
      $region32: #{temporal_block_forward.1} parent=11 // pred_fallthru
        _
      // Predicated region
      $region33: #{temporal_block_forward.1} parent=11 // pred_check
        %p243 = pneg %p166
      $region34: #{temporal_block_forward.1} parent=11 // pred_check_branch
        %245 = sbr.rel (%p243) target = $region36
      $region35: #{temporal_block_forward.1} parent=11 // pred_region
        _
      $region36: #{temporal_block_forward.1} parent=11 // pred_fallthru
        _
      // Predicated region
      $region37: #{temporal_block_forward.1} parent=11 // pred_check
        %p246 = pneg %p187
      $region38: #{temporal_block_forward.1} parent=11 // pred_check_branch
        %248 = sbr.rel (%p246) target = $region40
      $region39: #{temporal_block_forward.1} parent=11 // pred_region
        _
      $region40: #{temporal_block_forward.1} parent=11 // pred_fallthru
        _
    $region12: #{temporal_block_forward.1} parent=5 // pred_fallthru
      _
    %p249 = scmp.lt.s32.totalorder %s14, 2
    // Predicated region
    $region41: #{temporal_block_forward.1} parent=5 // pred_check
      %p250 = pneg %p249
    $region42: #{temporal_block_forward.1} parent=5 // pred_check_branch
      %252 = sbr.rel (%p250) target = $region44
    $region43: #{temporal_block_forward.1} parent=5 // pred_region
      // Predicated region
      $region45: #{temporal_block_forward.1} parent=43 // pred_check
        %p253 = pneg %p34
      $region46: #{temporal_block_forward.1} parent=43 // pred_check_branch
        %255 = sbr.rel (%p253) target = $region48
      $region47: #{temporal_block_forward.1} parent=43 // pred_region
        %p256 = scmp.lt.s32.totalorder %s14, 1
        %s257 = scalar_select %p256, %s14, 1
        %s258 = smul.addr %s257, 2
        %s259 = scalar_lea.vmem %s0, %s258
      $region48: #{temporal_block_forward.1} parent=43 // pred_fallthru
        _
    $region44: #{temporal_block_forward.1} parent=5 // pred_fallthru
      _
    %p260 = scmp.le.s32.totalorder 1, %s14
    %p261 = scmp.lt.s32.totalorder %s14, 3
    %p262 = pnand %p260, %p261
    %p263 = pneg %p262
    // Predicated region
    $region49: #{temporal_block_forward.1} parent=5 // pred_check
      _
    $region50: #{temporal_block_forward.1} parent=5 // pred_check_branch
      %265 = sbr.rel (%p262) target = $region52
    $region51: #{temporal_block_forward.1} parent=5 // pred_region
      %s266 = ssub.s32 %s14, 1
      %p267 = scmp.lt.s32.totalorder %s19, 1
      %s268 = scalar_select %p267, %s19, 1
      %s269 = smul.addr %s268, 2
      %s270 = scalar_lea.vmem %s0, %s269
      %p271 = pneg %p40
      %p272 = pneg %p37
      %p273 = pneg %p61
      %p274 = pneg %p58
      %p275 = pneg %p82
      %p276 = pneg %p79
      %p277 = pneg %p103
      %p278 = pneg %p100
      %p279 = pneg %p124
      %p280 = pneg %p121
      %p281 = pneg %p145
      %p282 = pneg %p142
      %p283 = pneg %p166
      %p284 = pneg %p163
      %p285 = pneg %p187
      %p286 = pneg %p184
      %p287 = pneg %p213
      %p288 = pneg %p210
      %p289 = scmp.lt.s32.totalorder %s19, 1
      %s290 = scalar_select %p289, %s19, 1
      %s291 = smul.addr %s290, 8
      %s292 = scalar_lea.vmem %s8, %s291
      %p293 = scmp.lt.s32.totalorder %s19, 1
      %s294 = scalar_select %p293, %s19, 1
      %s295 = smul.addr %s294, 2
      %s296 = scalar_lea.vmem %s0, %s295
      %p297 = scmp.lt.s32.totalorder %s19, 1
      %s298 = scalar_select %p297, %s19, 1
      %s299 = smul.addr %s298, 8
      %s300 = scalar_lea.vmem %s8, %s299
      %v302 = vld [vmem:[%s296] sm:$0x3]
      %s303 = scalar_lea.vmem %s1, 8
      %v304 = vld [vmem:[%s303] sm:$0xf]
      %v305 = vld [vmem:[%s1] sm:$0xf]
      %v308 = vunpack.c.l.s4 1983009808
      %v309 = vunpack.c.0.s8 %v308
      %v310 = vlaneseq
      %v311 = vshrl.u32 %v310, 7
      %v312 = vsub.s32 %v309, %v311
      %v313 = vrot.slane %v302, %v312
      %314 = vrot.lane.b32.xlu0 %v313, 4
      %v315 = vpop.permute.xlu0 %314
      %vm316 = vcmask 31744
      %v319 = vsel %vm316, 0, %v315
      %v321 = vld [vmem:[%s4] sm:$0x1]
      %v323 = vpack.i.b16 %v321, %v321
      %v325 = vlaneseq
      %v326 = vshrl.u32 %v325, 7
      %v327 = vsub.s32 0, %v326
      %v328 = vrot.slane %v323, %v327
      %v329 = vmul.bf16 %v319, %v328
      %v331 = vsel %vm316, %v305, 0
      %vm333 = vcmask 1041408
      %v335 = vsel %vm333, %v329, 0
      %337 = vmatprep.subr.bf16.mxu0 0
      %338 = vmatpush1.bf16.msra.mxu0 %v335
      %339 = vmatprep.subr.bf16.mxu0 0
      %340 = vmatpush1.bf16.msra.mxu0 0
      %341 = vmatprep.subr.bf16.mxu0 0
      %342 = vmatpush1.bf16.msra.mxu0 0
      %343 = vmatprep.subr.bf16.mxu0 0
      %344 = vmatpush1.bf16.msra.mxu0 0
      %345 = vmatprep.subr.bf16.mxu0 0
      %346 = vmatpush1.bf16.msra.mxu0 0
      %347 = vmatprep.subr.bf16.mxu0 0
      %348 = vmatpush1.bf16.msra.mxu0 0
      %349 = vmatprep.subr.bf16.mxu0 0
      %350 = vmatpush1.bf16.msra.mxu0 0
      %351 = vmatprep.subr.bf16.mxu0 0
      %352 = vmatpush1.bf16.msra.mxu0 0
      %353 = vmatprep.subr.bf16.mxu0 0
      %354 = vmatpush1.bf16.msra.mxu0 0
      %355 = vmatprep.subr.bf16.mxu0 0
      %356 = vmatpush1.bf16.msra.mxu0 0
      %357 = vmatprep.subr.bf16.mxu0 0
      %358 = vmatpush1.bf16.msra.mxu0 0
      %359 = vmatprep.subr.bf16.mxu0 0
      %360 = vmatpush1.bf16.msra.mxu0 0
      %361 = vmatprep.subr.bf16.mxu0 0
      %362 = vmatpush1.bf16.msra.mxu0 0
      %363 = vmatprep.subr.bf16.mxu0 0
      %364 = vmatpush1.bf16.msra.mxu0 0
      %365 = vmatprep.subr.bf16.mxu0 0
      %366 = vmatpush1.bf16.msra.mxu0 0
      %367 = vmatprep.subr.bf16.mxu0 0
      %368 = vmatpush1.bf16.msra.mxu0 0
      %369 = vmatprep.mubr.bf16.mxu0 0
      %370 = vmatmul.mubr.bf16.gmra.mrb[0].mxu0 %v331
      %v371 = vpop.f32.mrb[0].mxu0
      %v372 = vadd.f32 0.0, %v371
      %v373 = vpop.f32.mrb[0].mxu0
      %v374 = vpop.f32.mrb[0].mxu0
      %v375 = vpop.f32.mrb[0].mxu0
      %376 = vdwg.mxu0
      %v378 = vsel %vm316, %v304, 0
      %v381 = vsel %vm333, %v302, 0
      %383 = vmatprep.subr.bf16.mxu0 0
      %384 = vmatpush1.bf16.msra.mxu0 %v381
      %385 = vmatprep.subr.bf16.mxu0 0
      %386 = vmatpush1.bf16.msra.mxu0 0
      %387 = vmatprep.subr.bf16.mxu0 0
      %388 = vmatpush1.bf16.msra.mxu0 0
      %389 = vmatprep.subr.bf16.mxu0 0
      %390 = vmatpush1.bf16.msra.mxu0 0
      %391 = vmatprep.subr.bf16.mxu0 0
      %392 = vmatpush1.bf16.msra.mxu0 0
      %393 = vmatprep.subr.bf16.mxu0 0
      %394 = vmatpush1.bf16.msra.mxu0 0
      %395 = vmatprep.subr.bf16.mxu0 0
      %396 = vmatpush1.bf16.msra.mxu0 0
      %397 = vmatprep.subr.bf16.mxu0 0
      %398 = vmatpush1.bf16.msra.mxu0 0
      %399 = vmatprep.subr.bf16.mxu0 0
      %400 = vmatpush1.bf16.msra.mxu0 0
      %401 = vmatprep.subr.bf16.mxu0 0
      %402 = vmatpush1.bf16.msra.mxu0 0
      %403 = vmatprep.subr.bf16.mxu0 0
      %404 = vmatpush1.bf16.msra.mxu0 0
      %405 = vmatprep.subr.bf16.mxu0 0
      %406 = vmatpush1.bf16.msra.mxu0 0
      %407 = vmatprep.subr.bf16.mxu0 0
      %408 = vmatpush1.bf16.msra.mxu0 0
      %409 = vmatprep.subr.bf16.mxu0 0
      %410 = vmatpush1.bf16.msra.mxu0 0
      %411 = vmatprep.subr.bf16.mxu0 0
      %412 = vmatpush1.bf16.msra.mxu0 0
      %413 = vmatprep.subr.bf16.mxu0 0
      %414 = vmatpush1.bf16.msra.mxu0 0
      %415 = vmatprep.mubr.bf16.mxu0 0
      %416 = vmatmul.mubr.bf16.gmra.mrb[0].mxu0 %v378
      %v417 = vpop.f32.mrb[0].mxu0
      %v418 = vadd.f32 %v372, %v417
      %v419 = vpop.f32.mrb[0].mxu0
      %v420 = vpop.f32.mrb[0].mxu0
      %v421 = vpop.f32.mrb[0].mxu0
      %422 = vdwg.mxu0
      %s423 = scalar_lea.vmem %s1, 4
      %v424 = vld [vmem:[%s423] sm:$0xf]
      %425 = vrot.lane.b32.xlu0 %v313, 2
      %v426 = vpop.permute.xlu0 %425
      %vm427 = vcmask 15360
      %v429 = vsel %vm427, 0, %v426
      %v431 = vld [vmem:[%s4] sm:$0x1]
      %v433 = vshrl.u32 %v431, 16
      %v434 = vpack.i.b16 %v433, %v433
      %v436 = vlaneseq
      %v437 = vshrl.u32 %v436, 7
      %v438 = vsub.s32 0, %v437
      %v439 = vrot.slane %v434, %v438
      %v440 = vmul.bf16 %v429, %v439
      %v442 = vsel %vm316, %v424, 0
      %v445 = vsel %vm333, %v440, 0
      %447 = vmatprep.subr.bf16.mxu0 0
      %448 = vmatpush1.bf16.msra.mxu0 %v445
      %449 = vmatprep.subr.bf16.mxu0 0
      %450 = vmatpush1.bf16.msra.mxu0 0
      %451 = vmatprep.subr.bf16.mxu0 0
      %452 = vmatpush1.bf16.msra.mxu0 0
      %453 = vmatprep.subr.bf16.mxu0 0
      %454 = vmatpush1.bf16.msra.mxu0 0
      %455 = vmatprep.subr.bf16.mxu0 0
      %456 = vmatpush1.bf16.msra.mxu0 0
      %457 = vmatprep.subr.bf16.mxu0 0
      %458 = vmatpush1.bf16.msra.mxu0 0
      %459 = vmatprep.subr.bf16.mxu0 0
      %460 = vmatpush1.bf16.msra.mxu0 0
      %461 = vmatprep.subr.bf16.mxu0 0
      %462 = vmatpush1.bf16.msra.mxu0 0
      %463 = vmatprep.subr.bf16.mxu0 0
      %464 = vmatpush1.bf16.msra.mxu0 0
      %465 = vmatprep.subr.bf16.mxu0 0
      %466 = vmatpush1.bf16.msra.mxu0 0
      %467 = vmatprep.subr.bf16.mxu0 0
      %468 = vmatpush1.bf16.msra.mxu0 0
      %469 = vmatprep.subr.bf16.mxu0 0
      %470 = vmatpush1.bf16.msra.mxu0 0
      %471 = vmatprep.subr.bf16.mxu0 0
      %472 = vmatpush1.bf16.msra.mxu0 0
      %473 = vmatprep.subr.bf16.mxu0 0
      %474 = vmatpush1.bf16.msra.mxu0 0
      %475 = vmatprep.subr.bf16.mxu0 0
      %476 = vmatpush1.bf16.msra.mxu0 0
      %477 = vmatprep.subr.bf16.mxu0 0
      %478 = vmatpush1.bf16.msra.mxu0 0
      %479 = vmatprep.mubr.bf16.mxu0 0
      %480 = vmatmul.mubr.bf16.gmra.mrb[0].mxu0 %v442
      %v481 = vpop.f32.mrb[0].mxu0
      %v482 = vadd.f32 0.0, %v481
      %v483 = vpop.f32.mrb[0].mxu0
      %v484 = vpop.f32.mrb[0].mxu0
      %v485 = vpop.f32.mrb[0].mxu0
      %486 = vdwg.mxu0
      %v487 = vadd.f32 %v418, %v482
      %v488 = vld [vmem:[%s5] sm:$0xff]
      %490 = vset.pattern.permute.xlu0 0
      %491 = vperm.xlu0 %490, %v488
      %v492 = vpop.permute.xlu0 %491
      %v494 = vadd.f32 %v487, %v492
      %v495 = vmax.f32 %v494, 0.0
      %v496 = vpack.c.bf16 %v495, %v495
      %s497 = scalar_lea.vmem %s2, 8
      %v498 = vld [vmem:[%s497] sm:$0xf]
      %v499 = vld [vmem:[%s2] sm:$0xf]
      %501 = vrot.lane.b32.xlu0 %v496, 4
      %v502 = vpop.permute.xlu0 %501
      %v504 = vsel %vm316, 0, %v502
      %v506 = vmul.bf16 %v504, %v328
      %vm507 = vcmask 64512
      %v509 = vsel %vm507, %v499, 0
      %vm511 = vcmask 1043456
      %v513 = vsel %vm511, %v506, 0
      %515 = vmatprep.subr.bf16.mxu0 0
      %516 = vmatpush1.bf16.msra.mxu0 %v513
      %517 = vmatprep.subr.bf16.mxu0 0
      %518 = vmatpush1.bf16.msra.mxu0 0
      %519 = vmatprep.subr.bf16.mxu0 0
      %520 = vmatpush1.bf16.msra.mxu0 0
      %521 = vmatprep.subr.bf16.mxu0 0
      %522 = vmatpush1.bf16.msra.mxu0 0
      %523 = vmatprep.subr.bf16.mxu0 0
      %524 = vmatpush1.bf16.msra.mxu0 0
      %525 = vmatprep.subr.bf16.mxu0 0
      %526 = vmatpush1.bf16.msra.mxu0 0
      %527 = vmatprep.subr.bf16.mxu0 0
      %528 = vmatpush1.bf16.msra.mxu0 0
      %529 = vmatprep.subr.bf16.mxu0 0
      %530 = vmatpush1.bf16.msra.mxu0 0
      %531 = vmatprep.subr.bf16.mxu0 0
      %532 = vmatpush1.bf16.msra.mxu0 0
      %533 = vmatprep.subr.bf16.mxu0 0
      %534 = vmatpush1.bf16.msra.mxu0 0
      %535 = vmatprep.subr.bf16.mxu0 0
      %536 = vmatpush1.bf16.msra.mxu0 0
      %537 = vmatprep.subr.bf16.mxu0 0
      %538 = vmatpush1.bf16.msra.mxu0 0
      %539 = vmatprep.subr.bf16.mxu0 0
      %540 = vmatpush1.bf16.msra.mxu0 0
      %541 = vmatprep.subr.bf16.mxu0 0
      %542 = vmatpush1.bf16.msra.mxu0 0
      %543 = vmatprep.subr.bf16.mxu0 0
      %544 = vmatpush1.bf16.msra.mxu0 0
      %545 = vmatprep.subr.bf16.mxu0 0
      %546 = vmatpush1.bf16.msra.mxu0 0
      %547 = vmatprep.mubr.bf16.mxu0 0
      %548 = vmatmul.mubr.bf16.gmra.mrb[0].mxu0 %v509
      %v549 = vpop.f32.mrb[0].mxu0
      %v550 = vadd.f32 0.0, %v549
      %v551 = vpop.f32.mrb[0].mxu0
      %v552 = vpop.f32.mrb[0].mxu0
      %v553 = vpop.f32.mrb[0].mxu0
      %554 = vdwg.mxu0
      %v556 = vsel %vm507, %v498, 0
      %v559 = vsel %vm511, %v496, 0
      %561 = vmatprep.subr.bf16.mxu0 0
      %562 = vmatpush1.bf16.msra.mxu0 %v559
      %563 = vmatprep.subr.bf16.mxu0 0
      %564 = vmatpush1.bf16.msra.mxu0 0
      %565 = vmatprep.subr.bf16.mxu0 0
      %566 = vmatpush1.bf16.msra.mxu0 0
      %567 = vmatprep.subr.bf16.mxu0 0
      %568 = vmatpush1.bf16.msra.mxu0 0
      %569 = vmatprep.subr.bf16.mxu0 0
      %570 = vmatpush1.bf16.msra.mxu0 0
      %571 = vmatprep.subr.bf16.mxu0 0
      %572 = vmatpush1.bf16.msra.mxu0 0
      %573 = vmatprep.subr.bf16.mxu0 0
      %574 = vmatpush1.bf16.msra.mxu0 0
      %575 = vmatprep.subr.bf16.mxu0 0
      %576 = vmatpush1.bf16.msra.mxu0 0
      %577 = vmatprep.subr.bf16.mxu0 0
      %578 = vmatpush1.bf16.msra.mxu0 0
      %579 = vmatprep.subr.bf16.mxu0 0
      %580 = vmatpush1.bf16.msra.mxu0 0
      %581 = vmatprep.subr.bf16.mxu0 0
      %582 = vmatpush1.bf16.msra.mxu0 0
      %583 = vmatprep.subr.bf16.mxu0 0
      %584 = vmatpush1.bf16.msra.mxu0 0
      %585 = vmatprep.subr.bf16.mxu0 0
      %586 = vmatpush1.bf16.msra.mxu0 0
      %587 = vmatprep.subr.bf16.mxu0 0
      %588 = vmatpush1.bf16.msra.mxu0 0
      %589 = vmatprep.subr.bf16.mxu0 0
      %590 = vmatpush1.bf16.msra.mxu0 0
      %591 = vmatprep.subr.bf16.mxu0 0
      %592 = vmatpush1.bf16.msra.mxu0 0
      %593 = vmatprep.mubr.bf16.mxu0 0
      %594 = vmatmul.mubr.bf16.gmra.mrb[0].mxu0 %v556
      %v595 = vpop.f32.mrb[0].mxu0
      %v596 = vadd.f32 %v550, %v595
      %v597 = vpop.f32.mrb[0].mxu0
      %v598 = vpop.f32.mrb[0].mxu0
      %v599 = vpop.f32.mrb[0].mxu0
      %600 = vdwg.mxu0
      %s601 = scalar_lea.vmem %s2, 4
      %v602 = vld [vmem:[%s601] sm:$0xf]
      %603 = vrot.lane.b32.xlu0 %v496, 2
      %v604 = vpop.permute.xlu0 %603
      %v606 = vsel %vm427, 0, %v604
      %v608 = vmul.bf16 %v606, %v439
      %v610 = vsel %vm507, %v602, 0
      %v613 = vsel %vm511, %v608, 0
      %615 = vmatprep.subr.bf16.mxu0 0
      %616 = vmatpush1.bf16.msra.mxu0 %v613
      %617 = vmatprep.subr.bf16.mxu0 0
      %618 = vmatpush1.bf16.msra.mxu0 0
      %619 = vmatprep.subr.bf16.mxu0 0
      %620 = vmatpush1.bf16.msra.mxu0 0
      %621 = vmatprep.subr.bf16.mxu0 0
      %622 = vmatpush1.bf16.msra.mxu0 0
      %623 = vmatprep.subr.bf16.mxu0 0
      %624 = vmatpush1.bf16.msra.mxu0 0
      %625 = vmatprep.subr.bf16.mxu0 0
      %626 = vmatpush1.bf16.msra.mxu0 0
      %627 = vmatprep.subr.bf16.mxu0 0
      %628 = vmatpush1.bf16.msra.mxu0 0
      %629 = vmatprep.subr.bf16.mxu0 0
      %630 = vmatpush1.bf16.msra.mxu0 0
      %631 = vmatprep.subr.bf16.mxu0 0
      %632 = vmatpush1.bf16.msra.mxu0 0
      %633 = vmatprep.subr.bf16.mxu0 0
      %634 = vmatpush1.bf16.msra.mxu0 0
      %635 = vmatprep.subr.bf16.mxu0 0
      %636 = vmatpush1.bf16.msra.mxu0 0
      %637 = vmatprep.subr.bf16.mxu0 0
      %638 = vmatpush1.bf16.msra.mxu0 0
      %639 = vmatprep.subr.bf16.mxu0 0
      %640 = vmatpush1.bf16.msra.mxu0 0
      %641 = vmatprep.subr.bf16.mxu0 0
      %642 = vmatpush1.bf16.msra.mxu0 0
      %643 = vmatprep.subr.bf16.mxu0 0
      %644 = vmatpush1.bf16.msra.mxu0 0
      %645 = vmatprep.subr.bf16.mxu0 0
      %646 = vmatpush1.bf16.msra.mxu0 0
      %647 = vmatprep.mubr.bf16.mxu0 0
      %648 = vmatmul.mubr.bf16.gmra.mrb[0].mxu0 %v610
      %v649 = vpop.f32.mrb[0].mxu0
      %v650 = vadd.f32 0.0, %v649
      %v651 = vpop.f32.mrb[0].mxu0
      %v652 = vpop.f32.mrb[0].mxu0
      %v653 = vpop.f32.mrb[0].mxu0
      %654 = vdwg.mxu0
      %v655 = vadd.f32 %v596, %v650
      %v656 = vld [vmem:[%s6] sm:$0xff]
      %658 = vset.pattern.permute.xlu0 0
      %659 = vperm.xlu0 %658, %v656
      %v660 = vpop.permute.xlu0 %659
      %v662 = vadd.f32 %v655, %v660
      %v663 = vmax.f32 %v662, 0.0
      %v664 = vld [vmem:[%s3] sm:$0xf]
      %v665 = vld [vmem:[%s7] sm:$0xff]
      %667 = vset.pattern.permute.xlu0 0
      %668 = vperm.xlu0 %667, %v665
      %v669 = vpop.permute.xlu0 %668
      %v672 = vsel %vm316, %v664, 0
      %674 = vmatprep.subr.bf16.mxu0 0
      %675 = vmatpush1.bf16.msra.mxu0 %v381
      %676 = vmatprep.subr.bf16.mxu0 0
      %677 = vmatpush1.bf16.msra.mxu0 0
      %678 = vmatprep.subr.bf16.mxu0 0
      %679 = vmatpush1.bf16.msra.mxu0 0
      %680 = vmatprep.subr.bf16.mxu0 0
      %681 = vmatpush1.bf16.msra.mxu0 0
      %682 = vmatprep.subr.bf16.mxu0 0
      %683 = vmatpush1.bf16.msra.mxu0 0
      %684 = vmatprep.subr.bf16.mxu0 0
      %685 = vmatpush1.bf16.msra.mxu0 0
      %686 = vmatprep.subr.bf16.mxu0 0
      %687 = vmatpush1.bf16.msra.mxu0 0
      %688 = vmatprep.subr.bf16.mxu0 0
      %689 = vmatpush1.bf16.msra.mxu0 0
      %690 = vmatprep.subr.bf16.mxu0 0
      %691 = vmatpush1.bf16.msra.mxu0 0
      %692 = vmatprep.subr.bf16.mxu0 0
      %693 = vmatpush1.bf16.msra.mxu0 0
      %694 = vmatprep.subr.bf16.mxu0 0
      %695 = vmatpush1.bf16.msra.mxu0 0
      %696 = vmatprep.subr.bf16.mxu0 0
      %697 = vmatpush1.bf16.msra.mxu0 0
      %698 = vmatprep.subr.bf16.mxu0 0
      %699 = vmatpush1.bf16.msra.mxu0 0
      %700 = vmatprep.subr.bf16.mxu0 0
      %701 = vmatpush1.bf16.msra.mxu0 0
      %702 = vmatprep.subr.bf16.mxu0 0
      %703 = vmatpush1.bf16.msra.mxu0 0
      %704 = vmatprep.subr.bf16.mxu0 0
      %705 = vmatpush1.bf16.msra.mxu0 0
      %706 = vmatprep.mubr.bf16.mxu0 0
      %707 = vmatmul.mubr.bf16.gmra.mrb[0].mxu0 %v672
      %v708 = vpop.f32.mrb[0].mxu0
      %v709 = vadd.f32 %v669, %v708
      %v710 = vpop.f32.mrb[0].mxu0
      %v711 = vpop.f32.mrb[0].mxu0
      %v712 = vpop.f32.mrb[0].mxu0
      %713 = vdwg.mxu0
      %v714 = vadd.f32 %v663, %v709
      %v715 = vmax.f32 %v714, 0.0
      %vm716 = vcmask 261120
      %717 = vst.msk [vmem:[%s300] sm:$0xff] %vm716, %v715
      %p718 = scmp.lt.s32.totalorder %s19, 1
      %s719 = scalar_select %p718, %s19, 1
      %s720 = smul.addr %s719, 8
      %s721 = scalar_lea.vmem %s8, %s720
      // Predicated region
      $region53: #{temporal_block_forward.1} parent=51 // pred_check
        %p722 = pneg %p210
      $region54: #{temporal_block_forward.1} parent=51 // pred_check_branch
        %724 = sbr.rel (%p722) target = $region56
      $region55: #{temporal_block_forward.1} parent=51 // pred_region
        _
      $region56: #{temporal_block_forward.1} parent=51 // pred_fallthru
        _
    $region52: #{temporal_block_forward.1} parent=5 // pred_fallthru
      _
    %p725 = scmp.le.s32.totalorder 2, %s14
    // Predicated region
    $region57: #{temporal_block_forward.1} parent=5 // pred_check
      %p726 = pneg %p725
    $region58: #{temporal_block_forward.1} parent=5 // pred_check_branch
      %728 = sbr.rel (%p726) target = $region60
    $region59: #{temporal_block_forward.1} parent=5 // pred_region
      %s729 = ssub.s32 %s14, 2
      // Predicated region
      $region61: #{temporal_block_forward.1} parent=59 // pred_check
        %p730 = pneg %p216
      $region62: #{temporal_block_forward.1} parent=59 // pred_check_branch
        %732 = sbr.rel (%p730) target = $region64
      $region63: #{temporal_block_forward.1} parent=59 // pred_region
        %p733 = scmp.lt.s32.totalorder %s20, 1
        %s734 = scalar_select %p733, %s20, 1
        %s735 = smul.addr %s734, 8
        %s736 = scalar_lea.vmem %s8, %s735
      $region64: #{temporal_block_forward.1} parent=59 // pred_fallthru
        _
    $region60: #{temporal_block_forward.1} parent=5 // pred_fallthru
      _
  $region6: #{temporal_block_forward.1} parent=0 // loop_footer
    %s18 = sadd.s32 1, %s14
  $region7: #{temporal_block_forward.1} parent=0 // loop_footer_branch
    %13 = sbr.rel target = $region3
  $region8: #{temporal_block_forward.1} parent=0 // loop_exit
    _

</llo_original>
